<compile_context>
chip_gen: v7x
topology: tpu7x:2x2x1
jax: 0.10.0
libtpu: 0.0.40
codegen_flags: <defaults>
</compile_context>

<pallas_src>
import functools
import math

import jax
import jax.numpy as jnp
from jax.experimental import pallas as pl
from jax.experimental.pallas import tpu as pltpu


def _choose_tile(requested, dim, unit):
    """Pick a legal, MXU-friendly tile size for a dimension of size `dim`."""
    if dim <= requested:
        return dim                       # full dim is always a legal block dim
    t = max(unit, (requested // unit) * unit)
    if t >= 256:                         # snap to the 256-wide MXU on v6e/v7x
        t = (t // 256) * 256
    return t


# ----------------------------------------------------------------------------
# Pallas kernels: one (tm, tn) tile of  W @ V.T (+ wb[:,None] + vb[None,:])
# ----------------------------------------------------------------------------
def _score_bias_kernel(w_ref, vt_ref, wb_ref, vb_ref, o_ref, *, precision):
    # w_ref : (tm, d)   rows of W for this tile            (streamed over i)
    # vt_ref: (d, tn)   columns of V.T for this tile       (resident over i)
    # wb_ref: (tm, 1)   co-vocab bias column (lane-broadcast is free)
    # vb_ref: (1, tn)   vocab bias row (sublane-broadcast is free)
    # o_ref : (tm, tn)
    scores = jnp.dot(w_ref[...], vt_ref[...],
                     preferred_element_type=jnp.float32, precision=precision)
    scores = scores + wb_ref[...].astype(jnp.float32) + vb_ref[...].astype(jnp.float32)
    o_ref[...] = scores.astype(o_ref.dtype)


def _score_kernel(w_ref, vt_ref, o_ref, *, precision):
    scores = jnp.dot(w_ref[...], vt_ref[...],
                     preferred_element_type=jnp.float32, precision=precision)
    o_ref[...] = scores.astype(o_ref.dtype)


def embedding_learner_forward(V, W, vb=None, wb=None, *, vt=None,
                              tm=256, tn=2048,
                              out_dtype=jnp.float32, compute_dtype=None,
                              precision=None):
    """response = W @ V.T (+ wb[:,None] + vb[None,:]) as a Pallas TPU kernel.

    V : (vocab, d), W : (covocab, d), vb : (vocab,) or None, wb : (covocab,) or None.
    vt            : optional pre-transposed V of shape (d, vocab); skips the
                    per-call transpose (keep V in this layout across a training loop).
    compute_dtype : cast W / V.T to this dtype before the matmul (bf16 halves
                    streamed HBM bytes); accumulation is always f32.
    out_dtype     : output dtype; bf16 halves the dominant output-write stream.
    precision     : jax.lax.Precision for the in-kernel dot (HIGHEST for
                    bit-accurate f32; cost is hidden — the kernel is HBM-bound).
    Returns a (covocab, vocab) array of out_dtype.
    """
    vocab, d = V.shape
    covocab, d2 = W.shape
    assert d == d2
    bias = (vb is not None) and (wb is not None)

    # Pre-transpose V once -> canonical [M,K]@[K,N]; no per-tile XLU transpose.
    # TODO(synk): in a training loop keep V persistently in (d, vocab) layout
    # and pass it as `vt=` so this transpose is not re-materialized each call.
    if vt is None:
        vt = V.T                                            # (d, vocab)
    if compute_dtype is not None:
        W = W.astype(compute_dtype)
        vt = vt.astype(compute_dtype)

    # Tile sizes: tm on sublanes (>=8), tn on lanes (>=128). Full dims are
    # always legal.  The grid uses cdiv, so non-multiple edges are handled by
    # masked edge-block stores (no padding, no post-slice).
    tm = _choose_tile(tm, covocab, 8)
    tn = _choose_tile(tn, vocab, 128)
    grid = (pl.cdiv(vocab, tn), pl.cdiv(covocab, tm))       # (outer j, inner i)

    in_b = jnp.dtype(W.dtype).itemsize
    out_b = jnp.dtype(out_dtype).itemsize
    # Double-buffered input/output tiles + f32 matmul intermediate + bias tiles.
    need = (2 * (tm * d + d * tn) * in_b
            + 2 * tm * tn * out_b
            + tm * tn * 4
            + (2 * (tm + tn) * 4 if bias else 0))
    vmem_limit = int(min(48 * 1024 * 1024, max(8 * 1024 * 1024, need + need // 4)))

    compiler_params = pltpu.CompilerParams(
        # Outer (resident V.T) axis "parallel" so a megacore split gives each
        # core its own resident tile; inner streamed axis "arbitrary".
        dimension_semantics=("parallel", "arbitrary"),
        vmem_limit_bytes=vmem_limit,
    )
    out_shape = jax.ShapeDtypeStruct((covocab, vocab), out_dtype)

    if bias:
        wb_col = wb.reshape(covocab, 1)                     # lane-broadcasts free
        vb_row = vb.reshape(1, vocab)                       # sublane-broadcasts free
        kernel = functools.partial(_score_bias_kernel, precision=precision)
        return pl.pallas_call(
            kernel,
            out_shape=out_shape,
            grid_spec=pltpu.PrefetchScalarGridSpec(
                num_scalar_prefetch=0,
                grid=grid,
                in_specs=[
                    pl.BlockSpec((tm, d), lambda j, i: (i, 0)),   # W   (streams)
                    pl.BlockSpec((d, tn), lambda j, i: (0, j)),   # V.T (resident)
                    pl.BlockSpec((tm, 1), lambda j, i: (i, 0)),   # wb column
                    pl.BlockSpec((1, tn), lambda j, i: (0, j)),   # vb row
                ],
                out_specs=pl.BlockSpec((tm, tn), lambda j, i: (i, j)),
            ),
            compiler_params=compiler_params,
        )(W, vt, wb_col, vb_row)

    kernel = functools.partial(_score_kernel, precision=precision)
    return pl.pallas_call(
        kernel,
        out_shape=out_shape,
        grid_spec=pltpu.PrefetchScalarGridSpec(
            num_scalar_prefetch=0,
            grid=grid,
            in_specs=[
                pl.BlockSpec((tm, d), lambda j, i: (i, 0)),       # W   (streams)
                pl.BlockSpec((d, tn), lambda j, i: (0, j)),       # V.T (resident)
            ],
            out_specs=pl.BlockSpec((tm, tn), lambda j, i: (i, j)),
        ),
        compiler_params=compiler_params,
    )(W, vt)


# ----------------------------------------------------------------------------
# Deterministic parameter init (mirrors torch xavier_uniform_) + reference
# ----------------------------------------------------------------------------
def xavier_uniform(key, shape):
    # torch convention for a 2-D tensor: fan_out = shape[0], fan_in = shape[1]
    fan_out, fan_in = shape
    bound = math.sqrt(6.0 / (fan_in + fan_out))
    return jax.random.uniform(key, shape, jnp.float32, -bound, bound)


def reference_forward(V, W, vb=None, wb=None):
    out = W @ V.T
    if vb is not None and wb is not None:
        out = out + wb[:, None] + vb[None, :]
    return out


if __name__ == "__main__":
    # --- 1) bias model, tile-aligned shapes, f32 (matches torch semantics) ----
    vocab, covocab, d = 256, 128, 32
    kV, kW, kvb, kwb = jax.random.split(jax.random.PRNGKey(0), 4)
    V = xavier_uniform(kV, (vocab, d))                    # (vocab, d)
    W = xavier_uniform(kW, (covocab, d))                  # (covocab, d)
    vb = xavier_uniform(kvb, (1, vocab)).squeeze(0)       # (vocab,)
    wb = xavier_uniform(kwb, (1, covocab)).squeeze(0)     # (covocab,)

    out = jax.block_until_ready(embedding_learner_forward(V, W, vb, wb))
    ref = reference_forward(V, W, vb, wb)
    assert out.shape == (covocab, vocab)
    assert jnp.allclose(out, ref, atol=1e-5, rtol=1e-5), "bias-model mismatch"

    # --- 2) bias model, non-tile-multiple shapes, small explicit tiles --------
    # Exercises the cdiv grid / masked edge-block path (no padding, no slice).
    vocab2, covocab2, d2 = 200, 120, 48
    k = jax.random.split(jax.random.PRNGKey(1), 4)
    V2 = xavier_uniform(k[0], (vocab2, d2))
    W2 = xavier_uniform(k[1], (covocab2, d2))
    vb2 = xavier_uniform(k[2], (1, vocab2)).squeeze(0)
    wb2 = xavier_uniform(k[3], (1, covocab2)).squeeze(0)

    out2 = jax.block_until_ready(
        embedding_learner_forward(V2, W2, vb2, wb2, tm=64, tn=128))
    ref2 = reference_forward(V2, W2, vb2, wb2)
    assert out2.shape == (covocab2, vocab2)
    assert jnp.allclose(out2, ref2, atol=1e-5, rtol=1e-5), "masked-edge mismatch"

    # --- 3) no-bias model, bf16 fast path (halved HBM traffic) ----------------
    out3 = jax.block_until_ready(
        embedding_learner_forward(V2, W2, compute_dtype=jnp.bfloat16,
                                  out_dtype=jnp.bfloat16, tm=64, tn=128))
    ref3 = reference_forward(V2, W2)
    assert out3.shape == (covocab2, vocab2) and out3.dtype == jnp.bfloat16
    assert jnp.allclose(out3.astype(jnp.float32), ref3, atol=5e-2, rtol=5e-2), \
        "bf16 fast-path mismatch"

    print("KERNEL_OK")
</pallas_src>

<mosaic_0001>
module attributes {stable_mosaic.version = 11 : i64} {
  func.func @_score_bias_kernel(%arg0: i32, %arg1: i32, %arg2: memref<128x32xf32, #tpu.memory_space<vmem>>, %arg3: memref<32x256xf32, #tpu.memory_space<vmem>>, %arg4: memref<128x1xf32, #tpu.memory_space<vmem>>, %arg5: memref<1x256xf32, #tpu.memory_space<vmem>>, %arg6: memref<128x256xf32, #tpu.memory_space<vmem>>) attributes {dimension_semantics = [#tpu.dimension_semantics<parallel>, #tpu.dimension_semantics<arbitrary>], iteration_bounds = array<i64: 1, 1>, scalar_prefetch = 0 : i64, scratch_operands = 0 : i64, tpu.core_type = #tpu.core_type<tc>, window_params = [{transform_indices = @transform_0, window_bounds = array<i64: 128, 32>}, {transform_indices = @transform_1, window_bounds = array<i64: 32, 256>}, {transform_indices = @transform_2, window_bounds = array<i64: 128, 1>}, {transform_indices = @transform_3, window_bounds = array<i64: 1, 256>}, {transform_indices = @transform_4, window_bounds = array<i64: 128, 256>}]} {
    %c0 = arith.constant 0 : index
    %c0_0 = arith.constant 0 : index
    %0 = vector.load %arg2[%c0, %c0_0] : memref<128x32xf32, #tpu.memory_space<vmem>>, vector<128x32xf32>
    %c0_1 = arith.constant 0 : index
    %c0_2 = arith.constant 0 : index
    %1 = vector.load %arg3[%c0_1, %c0_2] : memref<32x256xf32, #tpu.memory_space<vmem>>, vector<32x256xf32>
    %cst = arith.constant dense<0.000000e+00> : vector<128x256xf32>
    %2 = tpu.matmul %0, %1, %cst {dimension_numbers = #tpu.dot_dimension_numbers<[1], [0], [0], [1], [0, 0, 1, 1], [], []>} : vector<128x32xf32>, vector<32x256xf32>, vector<128x256xf32> -> vector<128x256xf32>
    %c0_3 = arith.constant 0 : index
    %c0_4 = arith.constant 0 : index
    %3 = vector.load %arg4[%c0_3, %c0_4] : memref<128x1xf32, #tpu.memory_space<vmem>>, vector<128x1xf32>
    %4 = vector.broadcast %3 : vector<128x1xf32> to vector<128x256xf32>
    %5 = arith.addf %2, %4 : vector<128x256xf32>
    %c0_5 = arith.constant 0 : index
    %c0_6 = arith.constant 0 : index
    %6 = vector.load %arg5[%c0_5, %c0_6] : memref<1x256xf32, #tpu.memory_space<vmem>>, vector<1x256xf32>
    %7 = vector.broadcast %6 : vector<1x256xf32> to vector<128x256xf32>
    %8 = arith.addf %5, %7 : vector<128x256xf32>
    %c0_7 = arith.constant 0 : index
    %c0_8 = arith.constant 0 : index
    %9 = vector.load %arg6[%c0_7, %c0_8] : memref<128x256xf32, #tpu.memory_space<vmem>>, vector<128x256xf32>
    tpu.vector_store %arg6[%c0_7, %c0_8], %8 {strides = array<i32>} : memref<128x256xf32, #tpu.memory_space<vmem>>, vector<128x256xf32>,
    return
  }
  func.func @transform_0(%arg0: i32, %arg1: i32) -> (i32, i32) {
    %c0_i32 = arith.constant 0 : i32
    %c0_i32_0 = arith.constant 0 : i32
    return %arg1, %c0_i32 : i32, i32
  }
  func.func @transform_1(%arg0: i32, %arg1: i32) -> (i32, i32) {
    %c0_i32 = arith.constant 0 : i32
    %c0_i32_0 = arith.constant 0 : i32
    return %c0_i32, %arg0 : i32, i32
  }
  func.func @transform_2(%arg0: i32, %arg1: i32) -> (i32, i32) {
    %c0_i32 = arith.constant 0 : i32
    %c0_i32_0 = arith.constant 0 : i32
    return %arg1, %c0_i32 : i32, i32
  }
  func.func @transform_3(%arg0: i32, %arg1: i32) -> (i32, i32) {
    %c0_i32 = arith.constant 0 : i32
    %c0_i32_0 = arith.constant 0 : i32
    return %c0_i32, %arg0 : i32, i32
  }
  func.func @transform_4(%arg0: i32, %arg1: i32) -> (i32, i32) {
    %c0_i32 = arith.constant 0 : i32
    return %arg1, %arg0 : i32, i32
  }
}

</mosaic_0001>

<llo_original>
// kernel: tpu_custom_call.1
$region0: #{tpu_custom_call.1}
  #allocation0 [shape = 'u32[]', space=smem, size = 0x4, offset = 0x4, fixed_abs, tag = 'smem constant byte address 0x4 - core index']
  #allocation1 [shape = 'u32[144,128]{1,0:T(1,128)}', space=vmem, size = 0x12000, scoped, tag = 'internal scratch']
  %s0 = inlined_call_operand.vmem [shape: f32[128,32], index: 0, kind: input, shape index: {}]
  %s1 = inlined_call_operand.vmem [shape: f32[32,256], index: 1, kind: input, shape index: {}]
  %s2 = inlined_call_operand.vmem [shape: f32[128,1], index: 2, kind: input, shape index: {}]
  %s3 = inlined_call_operand.vmem [shape: f32[1,256], index: 3, kind: input, shape index: {}]
  %s4 = inlined_call_operand.hbm [shape: f32[128,256], index: 4, kind: output, shape index: {}]
  %s5 = sld [smem:[#allocation0]]
  $region26: #{tpu_custom_call.1} parent=0
    _
  %s7 = ssub.s32 1, %s5
  %s8 = scalar_select 0, %s7, %s5
  $region1: #{tpu_custom_call.1} parent=0
    #allocation2 [shape = 'u8[131072]{0}', space=vmem, size = 0x20000, scoped, tag = 'output window, operand 0, single buffered']
    #allocation3 [shape = 's32[1]{0}', space=sflag, size = 0x4, scoped, tag = 'scoped memory for tpu_custom_call.1']
    %9 = vsyncpa [#allocation3], 0
    // Predicated region
    $region2: #{tpu_custom_call.1} parent=1 // pred_check
      _
    $region3: #{tpu_custom_call.1} parent=1 // pred_check_branch
      %11 = sbr.rel (0) target = $region5
    $region4: #{tpu_custom_call.1} parent=1 // pred_region
      _
    $region5: #{tpu_custom_call.1} parent=1 // pred_fallthru
      _
    // Predicated region
    $region6: #{tpu_custom_call.1} parent=1 // pred_check
      _
    $region7: #{tpu_custom_call.1} parent=1 // pred_check_branch
      %13 = sbr.rel (0) target = $region9
    $region8: #{tpu_custom_call.1} parent=1 // pred_region
      _
    $region9: #{tpu_custom_call.1} parent=1 // pred_fallthru
      _
    // Predicated region
    $region10: #{tpu_custom_call.1} parent=1 // pred_check
      _
    $region11: #{tpu_custom_call.1} parent=1 // pred_check_branch
      %15 = sbr.rel (0) target = $region13
    $region12: #{tpu_custom_call.1} parent=1 // pred_region
      _
    $region13: #{tpu_custom_call.1} parent=1 // pred_fallthru
      _
    // Predicated region
    $region14: #{tpu_custom_call.1} parent=1 // pred_check
      _
    $region15: #{tpu_custom_call.1} parent=1 // pred_check_branch
      %17 = sbr.rel (0) target = $region17
    $region16: #{tpu_custom_call.1} parent=1 // pred_region
      _
    $region17: #{tpu_custom_call.1} parent=1 // pred_fallthru
      _
    %v18 = vld [vmem:[%s0] sm:$0xff]
    %v19 = vld [vmem:[%s0 + $0x8] sm:$0xff]
    %v20 = vld [vmem:[%s0 + $0x10] sm:$0xff]
    %v21 = vld [vmem:[%s0 + $0x18] sm:$0xff]
    %v22 = vld [vmem:[%s0 + $0x20] sm:$0xff]
    %v23 = vld [vmem:[%s0 + $0x28] sm:$0xff]
    %v24 = vld [vmem:[%s0 + $0x30] sm:$0xff]
    %v25 = vld [vmem:[%s0 + $0x38] sm:$0xff]
    %v26 = vld [vmem:[%s0 + $0x40] sm:$0xff]
    %v27 = vld [vmem:[%s0 + $0x48] sm:$0xff]
    %v28 = vld [vmem:[%s0 + $0x50] sm:$0xff]
    %v29 = vld [vmem:[%s0 + $0x58] sm:$0xff]
    %v30 = vld [vmem:[%s0 + $0x60] sm:$0xff]
    %v31 = vld [vmem:[%s0 + $0x68] sm:$0xff]
    %v32 = vld [vmem:[%s0 + $0x70] sm:$0xff]
    %v33 = vld [vmem:[%s0 + $0x78] sm:$0xff]
    %v34 = vld [vmem:[%s1] sm:$0xff]
    %v35 = vld [vmem:[%s1 + $0x8] sm:$0xff]
    %v36 = vld [vmem:[%s1 + $0x10] sm:$0xff]
    %v37 = vld [vmem:[%s1 + $0x18] sm:$0xff]
    %v38 = vld [vmem:[%s1 + $0x20] sm:$0xff]
    %v39 = vld [vmem:[%s1 + $0x28] sm:$0xff]
    %v40 = vld [vmem:[%s1 + $0x30] sm:$0xff]
    %v41 = vld [vmem:[%s1 + $0x38] sm:$0xff]
    %v42 = vld [vmem:[%s2] sm:$0xff]
    %v43 = vld [vmem:[%s2 + $0x8] sm:$0xff]
    %v44 = vld [vmem:[%s2 + $0x10] sm:$0xff]
    %v45 = vld [vmem:[%s2 + $0x18] sm:$0xff]
    %v46 = vld [vmem:[%s2 + $0x20] sm:$0xff]
    %v47 = vld [vmem:[%s2 + $0x28] sm:$0xff]
    %v48 = vld [vmem:[%s2 + $0x30] sm:$0xff]
    %v49 = vld [vmem:[%s2 + $0x38] sm:$0xff]
    %v50 = vld [vmem:[%s2 + $0x40] sm:$0xff]
    %v51 = vld [vmem:[%s2 + $0x48] sm:$0xff]
    %v52 = vld [vmem:[%s2 + $0x50] sm:$0xff]
    %v53 = vld [vmem:[%s2 + $0x58] sm:$0xff]
    %v54 = vld [vmem:[%s2 + $0x60] sm:$0xff]
    %v55 = vld [vmem:[%s2 + $0x68] sm:$0xff]
    %v56 = vld [vmem:[%s2 + $0x70] sm:$0xff]
    %v57 = vld [vmem:[%s2 + $0x78] sm:$0xff]
    %59 = vset.pattern.permute.xlu0 0
    %60 = vperm.xlu0 %59, %v42
    %v61 = vpop.permute.xlu0 %60
    %64 = vset.pattern.permute.xlu0 0
    %65 = vperm.xlu0 %64, %v43
    %v66 = vpop.permute.xlu0 %65
    %69 = vset.pattern.permute.xlu0 0
    %70 = vperm.xlu0 %69, %v44
    %v71 = vpop.permute.xlu0 %70
    %74 = vset.pattern.permute.xlu0 0
    %75 = vperm.xlu0 %74, %v45
    %v76 = vpop.permute.xlu0 %75
    %79 = vset.pattern.permute.xlu0 0
    %80 = vperm.xlu0 %79, %v46
    %v81 = vpop.permute.xlu0 %80
    %84 = vset.pattern.permute.xlu0 0
    %85 = vperm.xlu0 %84, %v47
    %v86 = vpop.permute.xlu0 %85
    %89 = vset.pattern.permute.xlu0 0
    %90 = vperm.xlu0 %89, %v48
    %v91 = vpop.permute.xlu0 %90
    %94 = vset.pattern.permute.xlu0 0
    %95 = vperm.xlu0 %94, %v49
    %v96 = vpop.permute.xlu0 %95
    %99 = vset.pattern.permute.xlu0 0
    %100 = vperm.xlu0 %99, %v50
    %v101 = vpop.permute.xlu0 %100
    %104 = vset.pattern.permute.xlu0 0
    %105 = vperm.xlu0 %104, %v51
    %v106 = vpop.permute.xlu0 %105
    %109 = vset.pattern.permute.xlu0 0
    %110 = vperm.xlu0 %109, %v52
    %v111 = vpop.permute.xlu0 %110
    %114 = vset.pattern.permute.xlu0 0
    %115 = vperm.xlu0 %114, %v53
    %v116 = vpop.permute.xlu0 %115
    %119 = vset.pattern.permute.xlu0 0
    %120 = vperm.xlu0 %119, %v54
    %v121 = vpop.permute.xlu0 %120
    %124 = vset.pattern.permute.xlu0 0
    %125 = vperm.xlu0 %124, %v55
    %v126 = vpop.permute.xlu0 %125
    %129 = vset.pattern.permute.xlu0 0
    %130 = vperm.xlu0 %129, %v56
    %v131 = vpop.permute.xlu0 %130
    %134 = vset.pattern.permute.xlu0 0
    %135 = vperm.xlu0 %134, %v57
    %v136 = vpop.permute.xlu0 %135
    %vm138 = vcmask 261120
    %v140 = vsel %vm138, %v18, 0
    %v143 = vsel %vm138, %v19, 0
    %v146 = vsel %vm138, %v20, 0
    %v149 = vsel %vm138, %v21, 0
    %v152 = vsel %vm138, %v22, 0
    %v155 = vsel %vm138, %v23, 0
    %v158 = vsel %vm138, %v24, 0
    %v161 = vsel %vm138, %v25, 0
    %v164 = vsel %vm138, %v26, 0
    %v167 = vsel %vm138, %v27, 0
    %v170 = vsel %vm138, %v28, 0
    %v173 = vsel %vm138, %v29, 0
    %v176 = vsel %vm138, %v30, 0
    %v179 = vsel %vm138, %v31, 0
    %v182 = vsel %vm138, %v32, 0
    %v185 = vsel %vm138, %v33, 0
    %187 = vmatprep.subr.mxu0 %v35
    %188 = vmatpush1.msra.mxu0 %v34
    %189 = vmatprep.subr.mxu0 %v37
    %190 = vmatpush1.msra.mxu0 %v36
    %191 = vmatprep.subr.mxu0 %v39
    %192 = vmatpush1.msra.mxu0 %v38
    %193 = vmatprep.subr.mxu0 %v41
    %194 = vmatpush1.msra.mxu0 %v40
    %195 = vmatprep.subr.mxu0 0.0
    %196 = vmatpush1.msra.mxu0 0.0
    %197 = vmatprep.subr.mxu0 0.0
    %198 = vmatpush1.msra.mxu0 0.0
    %199 = vmatprep.subr.mxu0 0.0
    %200 = vmatpush1.msra.mxu0 0.0
    %201 = vmatprep.subr.mxu0 0.0
    %202 = vmatpush1.msra.mxu0 0.0
    %203 = vmatprep.subr.mxu0 0.0
    %204 = vmatpush1.msra.mxu0 0.0
    %205 = vmatprep.subr.mxu0 0.0
    %206 = vmatpush1.msra.mxu0 0.0
    %207 = vmatprep.subr.mxu0 0.0
    %208 = vmatpush1.msra.mxu0 0.0
    %209 = vmatprep.subr.mxu0 0.0
    %210 = vmatpush1.msra.mxu0 0.0
    %211 = vmatprep.subr.mxu0 0.0
    %212 = vmatpush1.msra.mxu0 0.0
    %213 = vmatprep.subr.mxu0 0.0
    %214 = vmatpush1.msra.mxu0 0.0
    %215 = vmatprep.subr.mxu0 0.0
    %216 = vmatpush1.msra.mxu0 0.0
    %217 = vmatprep.subr.mxu0 0.0
    %218 = vmatpush1.msra.mxu0 0.0
    %219 = vmatprep.subr.mxu0 0.0
    %220 = vmatpush1.msra.mxu0 0.0
    %221 = vmatprep.subr.mxu0 0.0
    %222 = vmatpush1.msra.mxu0 0.0
    %223 = vmatprep.subr.mxu0 0.0
    %224 = vmatpush1.msra.mxu0 0.0
    %225 = vmatprep.subr.mxu0 0.0
    %226 = vmatpush1.msra.mxu0 0.0
    %227 = vmatprep.subr.mxu0 0.0
    %228 = vmatpush1.msra.mxu0 0.0
    %229 = vmatprep.subr.mxu0 0.0
    %230 = vmatpush1.msra.mxu0 0.0
    %231 = vmatprep.subr.mxu0 0.0
    %232 = vmatpush1.msra.mxu0 0.0
    %233 = vmatprep.subr.mxu0 0.0
    %234 = vmatpush1.msra.mxu0 0.0
    %235 = vmatprep.subr.mxu0 0.0
    %236 = vmatpush1.msra.mxu0 0.0
    %237 = vmatprep.subr.mxu0 0.0
    %238 = vmatpush1.msra.mxu0 0.0
    %239 = vmatprep.subr.mxu0 0.0
    %240 = vmatpush1.msra.mxu0 0.0
    %241 = vmatprep.subr.mxu0 0.0
    %242 = vmatpush1.msra.mxu0 0.0
    %243 = vmatprep.subr.mxu0 0.0
    %244 = vmatpush1.msra.mxu0 0.0
    %245 = vmatprep.subr.mxu0 0.0
    %246 = vmatpush1.msra.mxu0 0.0
    %247 = vmatprep.subr.mxu0 0.0
    %248 = vmatpush1.msra.mxu0 0.0
    %249 = vmatprep.subr.mxu0 0.0
    %250 = vmatpush1.msra.mxu0 0.0
    %251 = vmatprep.mubr.f32.mxu0 0.0
    %252 = vmatmul.mubr.f32.gmra.mrb[0].mxu0 %v140
    %v253 = vpop.f32.mrb[0].mxu0
    %v254 = vadd.f32 %v61, %v253
    %v255 = vpop.f32.mrb[0].mxu0
    %v256 = vadd.f32 %v61, %v255
    %257 = vmatprep.mubr.f32.mxu0 0.0
    %258 = vmatmul.mubr.f32.gmra.mrb[0].mxu0 %v143
    %v259 = vpop.f32.mrb[0].mxu0
    %v260 = vadd.f32 %v66, %v259
    %v261 = vpop.f32.mrb[0].mxu0
    %v262 = vadd.f32 %v66, %v261
    %263 = vmatprep.mubr.f32.mxu0 0.0
    %264 = vmatmul.mubr.f32.gmra.mrb[0].mxu0 %v146
    %v265 = vpop.f32.mrb[0].mxu0
    %v266 = vadd.f32 %v71, %v265
    %v267 = vpop.f32.mrb[0].mxu0
    %v268 = vadd.f32 %v71, %v267
    %269 = vmatprep.mubr.f32.mxu0 0.0
    %270 = vmatmul.mubr.f32.gmra.mrb[0].mxu0 %v149
    %v271 = vpop.f32.mrb[0].mxu0
    %v272 = vadd.f32 %v76, %v271
    %v273 = vpop.f32.mrb[0].mxu0
    %v274 = vadd.f32 %v76, %v273
    %275 = vmatprep.mubr.f32.mxu0 0.0
    %276 = vmatmul.mubr.f32.gmra.mrb[0].mxu0 %v152
    %v277 = vpop.f32.mrb[0].mxu0
    %v278 = vadd.f32 %v81, %v277
    %v279 = vpop.f32.mrb[0].mxu0
    %v280 = vadd.f32 %v81, %v279
    %281 = vmatprep.mubr.f32.mxu0 0.0
    %282 = vmatmul.mubr.f32.gmra.mrb[0].mxu0 %v155
    %v283 = vpop.f32.mrb[0].mxu0
    %v284 = vadd.f32 %v86, %v283
    %v285 = vpop.f32.mrb[0].mxu0
    %v286 = vadd.f32 %v86, %v285
    %287 = vmatprep.mubr.f32.mxu0 0.0
    %288 = vmatmul.mubr.f32.gmra.mrb[0].mxu0 %v158
    %v289 = vpop.f32.mrb[0].mxu0
    %v290 = vadd.f32 %v91, %v289
    %v291 = vpop.f32.mrb[0].mxu0
    %v292 = vadd.f32 %v91, %v291
    %293 = vmatprep.mubr.f32.mxu0 0.0
    %294 = vmatmul.mubr.f32.gmra.mrb[0].mxu0 %v161
    %v295 = vpop.f32.mrb[0].mxu0
    %v296 = vadd.f32 %v96, %v295
    %v297 = vpop.f32.mrb[0].mxu0
    %v298 = vadd.f32 %v96, %v297
    %299 = vmatprep.mubr.f32.mxu0 0.0
    %300 = vmatmul.mubr.f32.gmra.mrb[0].mxu0 %v164
    %v301 = vpop.f32.mrb[0].mxu0
    %v302 = vadd.f32 %v101, %v301
    %v303 = vpop.f32.mrb[0].mxu0
    %v304 = vadd.f32 %v101, %v303
    %305 = vmatprep.mubr.f32.mxu0 0.0
    %306 = vmatmul.mubr.f32.gmra.mrb[0].mxu0 %v167
    %v307 = vpop.f32.mrb[0].mxu0
    %v308 = vadd.f32 %v106, %v307
    %v309 = vpop.f32.mrb[0].mxu0
    %v310 = vadd.f32 %v106, %v309
    %311 = vmatprep.mubr.f32.mxu0 0.0
    %312 = vmatmul.mubr.f32.gmra.mrb[0].mxu0 %v170
    %v313 = vpop.f32.mrb[0].mxu0
    %v314 = vadd.f32 %v111, %v313
    %v315 = vpop.f32.mrb[0].mxu0
    %v316 = vadd.f32 %v111, %v315
    %317 = vmatprep.mubr.f32.mxu0 0.0
    %318 = vmatmul.mubr.f32.gmra.mrb[0].mxu0 %v173
    %v319 = vpop.f32.mrb[0].mxu0
    %v320 = vadd.f32 %v116, %v319
    %v321 = vpop.f32.mrb[0].mxu0
    %v322 = vadd.f32 %v116, %v321
    %323 = vmatprep.mubr.f32.mxu0 0.0
    %324 = vmatmul.mubr.f32.gmra.mrb[0].mxu0 %v176
    %v325 = vpop.f32.mrb[0].mxu0
    %v326 = vadd.f32 %v121, %v325
    %v327 = vpop.f32.mrb[0].mxu0
    %v328 = vadd.f32 %v121, %v327
    %329 = vmatprep.mubr.f32.mxu0 0.0
    %330 = vmatmul.mubr.f32.gmra.mrb[0].mxu0 %v179
    %v331 = vpop.f32.mrb[0].mxu0
    %v332 = vadd.f32 %v126, %v331
    %v333 = vpop.f32.mrb[0].mxu0
    %v334 = vadd.f32 %v126, %v333
    %335 = vmatprep.mubr.f32.mxu0 0.0
    %336 = vmatmul.mubr.f32.gmra.mrb[0].mxu0 %v182
    %v337 = vpop.f32.mrb[0].mxu0
    %v338 = vadd.f32 %v131, %v337
    %v339 = vpop.f32.mrb[0].mxu0
    %v340 = vadd.f32 %v131, %v339
    %341 = vmatprep.mubr.f32.mxu0 0.0
    %342 = vmatmul.mubr.f32.gmra.mrb[0].mxu0 %v185
    %v343 = vpop.f32.mrb[0].mxu0
    %v344 = vadd.f32 %v136, %v343
    %v345 = vpop.f32.mrb[0].mxu0
    %v346 = vadd.f32 %v136, %v345
    %347 = vdwg.mxu0
    %v348 = vld [vmem:[%s3] sm:$0x3]
    %v350 = vlaneseq
    %v351 = vshrl.u32 %v350, 7
    %v352 = vsub.s32 0, %v351
    %v353 = vrot.slane %v348, %v352
    %v354 = vlaneseq
    %v355 = vshrl.u32 %v354, 7
    %v356 = vsub.s32 1, %v355
    %v357 = vrot.slane %v348, %v356
    %v360 = vadd.f32 %v254, %v353
    %v361 = vadd.f32 %v256, %v357
    %v362 = vadd.f32 %v260, %v353
    %v363 = vadd.f32 %v262, %v357
    %v364 = vadd.f32 %v266, %v353
    %v365 = vadd.f32 %v268, %v357
    %v366 = vadd.f32 %v272, %v353
    %v367 = vadd.f32 %v274, %v357
    %v368 = vadd.f32 %v278, %v353
    %v369 = vadd.f32 %v280, %v357
    %v370 = vadd.f32 %v284, %v353
    %v371 = vadd.f32 %v286, %v357
    %v372 = vadd.f32 %v290, %v353
    %v373 = vadd.f32 %v292, %v357
    %v374 = vadd.f32 %v296, %v353
    %v375 = vadd.f32 %v298, %v357
    %v376 = vadd.f32 %v302, %v353
    %v377 = vadd.f32 %v304, %v357
    %v378 = vadd.f32 %v308, %v353
    %v379 = vadd.f32 %v310, %v357
    %v380 = vadd.f32 %v314, %v353
    %v381 = vadd.f32 %v316, %v357
    %v382 = vadd.f32 %v320, %v353
    %v383 = vadd.f32 %v322, %v357
    %v384 = vadd.f32 %v326, %v353
    %v385 = vadd.f32 %v328, %v357
    %v386 = vadd.f32 %v332, %v353
    %v387 = vadd.f32 %v334, %v357
    %v388 = vadd.f32 %v338, %v353
    %v389 = vadd.f32 %v340, %v357
    %v390 = vadd.f32 %v344, %v353
    %v391 = vadd.f32 %v346, %v357
    %392 = vst [vmem:[#allocation2] sm:$0xff] %v360
    %393 = vst [vmem:[#allocation2 + $0x8] sm:$0xff] %v361
    %394 = vst [vmem:[#allocation2 + $0x10] sm:$0xff] %v362
    %395 = vst [vmem:[#allocation2 + $0x18] sm:$0xff] %v363
    %396 = vst [vmem:[#allocation2 + $0x20] sm:$0xff] %v364
    %397 = vst [vmem:[#allocation2 + $0x28] sm:$0xff] %v365
    %398 = vst [vmem:[#allocation2 + $0x30] sm:$0xff] %v366
    %399 = vst [vmem:[#allocation2 + $0x38] sm:$0xff] %v367
    %400 = vst [vmem:[#allocation2 + $0x40] sm:$0xff] %v368
    %401 = vst [vmem:[#allocation2 + $0x48] sm:$0xff] %v369
    %402 = vst [vmem:[#allocation2 + $0x50] sm:$0xff] %v370
    %403 = vst [vmem:[#allocation2 + $0x58] sm:$0xff] %v371
    %404 = vst [vmem:[#allocation2 + $0x60] sm:$0xff] %v372
    %405 = vst [vmem:[#allocation2 + $0x68] sm:$0xff] %v373
    %406 = vst [vmem:[#allocation2 + $0x70] sm:$0xff] %v374
    %407 = vst [vmem:[#allocation2 + $0x78] sm:$0xff] %v375
    %408 = vst [vmem:[#allocation2 + $0x80] sm:$0xff] %v376
    %409 = vst [vmem:[#allocation2 + $0x88] sm:$0xff] %v377
    %410 = vst [vmem:[#allocation2 + $0x90] sm:$0xff] %v378
    %411 = vst [vmem:[#allocation2 + $0x98] sm:$0xff] %v379
    %412 = vst [vmem:[#allocation2 + $0xa0] sm:$0xff] %v380
    %413 = vst [vmem:[#allocation2 + $0xa8] sm:$0xff] %v381
    %414 = vst [vmem:[#allocation2 + $0xb0] sm:$0xff] %v382
    %415 = vst [vmem:[#allocation2 + $0xb8] sm:$0xff] %v383
    %416 = vst [vmem:[#allocation2 + $0xc0] sm:$0xff] %v384
    %417 = vst [vmem:[#allocation2 + $0xc8] sm:$0xff] %v385
    %418 = vst [vmem:[#allocation2 + $0xd0] sm:$0xff] %v386
    %419 = vst [vmem:[#allocation2 + $0xd8] sm:$0xff] %v387
    %420 = vst [vmem:[#allocation2 + $0xe0] sm:$0xff] %v388
    %421 = vst [vmem:[#allocation2 + $0xe8] sm:$0xff] %v389
    %422 = vst [vmem:[#allocation2 + $0xf0] sm:$0xff] %v390
    %423 = vst [vmem:[#allocation2 + $0xf8] sm:$0xff] %v391
    // Predicated region
    $region18: #{tpu_custom_call.1} parent=1 // pred_check
      _
    $region19: #{tpu_custom_call.1} parent=1 // pred_check_branch
      %425 = sbr.rel (0) target = $region21
    $region20: #{tpu_custom_call.1} parent=1 // pred_region
      %s427 = ssub.s32 4096, 4096
      %428 = vsyncadd [#allocation3], %s427
      %s429 = sshll.u32 [#allocation2], 4
      %s430 = int_to_ptr.vmem [resolvable:$true] %s429
      %435 = dma.vmem_to_hbm [thread:$0]  %s430, 4096, %s4, [#allocation3], 256, 256, 16
    $region21: #{tpu_custom_call.1} parent=1 // pred_fallthru
      _
    // Predicated region
    $region22: #{tpu_custom_call.1} parent=1 // pred_check
      _
    $region23: #{tpu_custom_call.1} parent=1 // pred_check_branch
      %437 = sbr.rel (0) target = $region25
    $region24: #{tpu_custom_call.1} parent=1 // pred_region
      %438 = dma.done [#allocation3], 4096
    $region25: #{tpu_custom_call.1} parent=1 // pred_fallthru
      _
    %439 = vsyncpa [#allocation3], 1

</llo_original>
